<compile_context>
chip_gen: v6e
topology: v6e:2x2x1
jax: 0.10.0
libtpu: 0.0.40
codegen_flags: <defaults>
</compile_context>

<pallas_src>
import jax
import jax.numpy as jnp
from jax.experimental import pallas as pl
from jax.experimental.pallas import tpu as pltpu

_COLOR_WEIGHTS = (0.2989, 0.587, 0.114)   # same constants as the PyTorch module
_LANES = 128


# --------------------------------------------------------------------------- #
# Pallas kernel: per-(batch, channel) in-place scaling with block skipping.
# --------------------------------------------------------------------------- #
def _make_gray_kernel(n_groups):
    def kernel(scale_ref, *refs):
        # scale_ref : SMEM (B*C,) f32   — per-(batch, channel) multiplier
        # refs      : n_groups HBM inputs, n_groups HBM outputs (aliased to the
        #             inputs), then scratch: VMEM buffer + DMA semaphores.
        in_refs = refs[:n_groups]
        out_refs = refs[n_groups:2 * n_groups]
        buf = refs[2 * n_groups]          # VMEM (n_groups, rows, 128)
        sem = refs[2 * n_groups + 1]      # DMA sems (n_groups,)

        bc = pl.program_id(0)
        s = scale_ref[bc]                 # SMEM scalar read -> sreg splat

        # Non-selected channels (scale == 1.0): do nothing.  The output HBM
        # buffer aliases the input, so it already holds the right bytes and we
        # skip both the read and the write (the ~95% common case).
        @pl.when(s != 1.0)
        def _():
            # HBM -> VMEM for every group (DMAs overlap each other).
            for g in range(n_groups):
                pltpu.make_async_copy(in_refs[g].at[bc], buf.at[g], sem.at[g]).start()
            # Scale in VMEM and write back in place.
            for g in range(n_groups):
                pltpu.make_async_copy(in_refs[g].at[bc], buf.at[g], sem.at[g]).wait()
                x = buf[g].astype(jnp.float32) * s
                if jnp.issubdtype(buf.dtype, jnp.integer):
                    x = jnp.round(x)      # avoid truncation-toward-zero for int images
                buf[g] = x.astype(buf.dtype)
                pltpu.make_async_copy(buf.at[g], out_refs[g].at[bc], sem.at[g]).start()
            for g in range(n_groups):
                pltpu.make_async_copy(buf.at[g], out_refs[g].at[bc], sem.at[g]).wait()

    return kernel


def _scale_channels_pallas(row_imgs, scale_flat):
    """row_imgs: list of (B*C, rows, 128) arrays (identical shape & dtype).
    scale_flat: (B*C,) f32 per-(batch, channel) multiplier (scalar-prefetched)."""
    n = len(row_imgs)
    n_bc, rows, lanes = row_imgs[0].shape
    dtype = row_imgs[0].dtype

    # One whole channel slab per grid step lives in VMEM; raise the scoped
    # limit only if it would not fit the smallest (v5e, 16 MiB) default.
    vmem_needed = n * rows * lanes * jnp.dtype(dtype).itemsize
    vmem_limit = None
    if vmem_needed > (12 << 20):
        vmem_limit = min(vmem_needed + (8 << 20), 48 << 20)

    any_spec = pl.BlockSpec(memory_space=pl.ANY)

    grid_spec = pltpu.PrefetchScalarGridSpec(
        num_scalar_prefetch=1,
        grid=(n_bc,),
        in_specs=[any_spec] * n,
        out_specs=[any_spec] * n,
        scratch_shapes=[
            pltpu.VMEM((n, rows, lanes), dtype),
            pltpu.SemaphoreType.DMA((n,)),
        ],
    )

    outs = pl.pallas_call(
        _make_gray_kernel(n),
        grid_spec=grid_spec,
        out_shape=[jax.ShapeDtypeStruct((n_bc, rows, lanes), dtype)
                   for _ in range(n)],
        # Arg 0 is the scalar-prefetch scale table; image g is input 1+g.
        # Each image is donated to its corresponding output (in-place op).
        input_output_aliases={1 + g: g for g in range(n)},
        compiler_params=pltpu.CompilerParams(
            dimension_semantics=("parallel",),
            vmem_limit_bytes=vmem_limit),
    )(scale_flat, *row_imgs)
    if not isinstance(outs, (list, tuple)):
        outs = [outs]
    return list(outs)


# --------------------------------------------------------------------------- #
# Layout helpers: NCHW image <-> lane-dense (B*C, rows, 128) view.
# --------------------------------------------------------------------------- #
def _image_to_rows(img):
    B, C, H, W = img.shape
    hw = H * W
    hw_pad = pl.cdiv(hw, _LANES) * _LANES
    flat = img.reshape(B * C, hw)
    if hw_pad != hw:
        # TODO(synk): padding costs an extra full-image copy on both sides of
        # the kernel; callers should prefer H*W % 128 == 0.
        flat = jnp.pad(flat, ((0, 0), (0, hw_pad - hw)))
    return flat.reshape(B * C, hw_pad // _LANES, _LANES)


def _rows_to_image(rows, shape):
    B, C, H, W = shape
    hw = H * W
    flat = rows.reshape(B * C, -1)
    if flat.shape[1] != hw:
        flat = flat[:, :hw]
    return flat.reshape(B, C, H, W)


# --------------------------------------------------------------------------- #
# Forward-pass glue (matches the PyTorch module).
# --------------------------------------------------------------------------- #
def _apply_grayscale(image_groups, avg_groups, gray_tag):
    w = jnp.asarray(_COLOR_WEIGHTS, jnp.float32)
    sel = gray_tag.astype(jnp.bool_)                                     # (B,)
    # Per-(batch, channel) multiplier; exactly 1.0 where not selected so the
    # kernel's `scale != 1.0` skip triggers.  Flat index = b*3 + c, matching
    # the (B, C, H, W) -> (B*C, ...) reshape order.
    scale_bc = jnp.where(sel[:, None], w[None, :], jnp.float32(1.0))     # (B, 3)
    scale_flat = scale_bc.reshape(-1)                                    # (B*3,)

    # One pallas_call per (shape, dtype) bucket: template + search with the
    # same shape share a launch; different shapes are never concatenated.
    buckets = {}
    for gi, img in enumerate(image_groups):
        buckets.setdefault((img.shape, str(img.dtype)), []).append(gi)

    new_images = [None] * len(image_groups)
    for (shape, _), idxs in buckets.items():
        rows_list = [_image_to_rows(image_groups[gi]) for gi in idxs]
        outs = _scale_channels_pallas(rows_list, scale_flat)
        for gi, o in zip(idxs, outs):
            new_images[gi] = _rows_to_image(o, shape)

    # Avg-channel update: (B, 3) per group — tiny, pure-JAX glue (not worth a kernel).
    new_avgs = []
    for avg in avg_groups:
        gray = jnp.sum(avg.astype(jnp.float32) * w[None, :], axis=-1, keepdims=True)
        mixed = jnp.where(sel[:, None], jnp.broadcast_to(gray, avg.shape),
                          avg.astype(jnp.float32))
        new_avgs.append(mixed.astype(avg.dtype))

    return new_images, new_avgs


class GrayScale:
    """JAX/Pallas mirror of the PyTorch GrayScale joint transform."""

    def __init__(self, gray_probability=0.05):
        self.gray_prob = gray_probability

    def __call__(self, image_groups, bbox_groups, avg_groups, masks,
                 *, key=None, gray_tag=None):
        batch = image_groups[0].shape[0]
        if gray_tag is None:
            # Mirrors `torch.rand([batch]) <= gray_prob` (per-instance coin flip).
            if key is None:
                key = jax.random.PRNGKey(0)
            gray_tag = jax.random.uniform(key, (batch,)) <= self.gray_prob
        new_images, new_avgs = _apply_grayscale(image_groups, avg_groups, gray_tag)
        return new_images, bbox_groups, new_avgs, masks


# --------------------------------------------------------------------------- #
# Pure-JAX reference + self-check.
# --------------------------------------------------------------------------- #
def _reference(image_groups, avg_groups, gray_tag):
    w = jnp.asarray(_COLOR_WEIGHTS, jnp.float32)
    m4 = gray_tag[:, None, None, None]
    ref_imgs = [jnp.where(m4, img * w[None, :, None, None], img) for img in image_groups]
    ref_avgs = []
    for avg in avg_groups:
        g = jnp.sum(avg * w[None, :], axis=-1, keepdims=True)
        ref_avgs.append(jnp.where(gray_tag[:, None], jnp.broadcast_to(g, avg.shape), avg))
    return ref_imgs, ref_avgs


if __name__ == "__main__":
    key = jax.random.PRNGKey(0)
    k1, k2, k3, k4, k5, k6, ktag = jax.random.split(key, 7)

    B, C, H, W = 2, 3, 16, 16
    template_images = jax.random.uniform(k1, (B, C, H, W), jnp.float32)
    search_images = jax.random.uniform(k2, (B, C, H, W), jnp.float32)
    template_anno = jax.random.uniform(k3, (B, 4), jnp.float32)
    search_anno = jax.random.uniform(k4, (B, 4), jnp.float32)
    template_avg = jax.random.uniform(k5, (B, C), jnp.float32)
    search_avg = jax.random.uniform(k6, (B, C), jnp.float32)

    image_groups = [template_images, search_images]
    bbox_groups = [template_anno, search_anno]
    avg_groups = [template_avg, search_avg]
    masks = jnp.ones((B,), jnp.bool_)

    transform = GrayScale(gray_probability=0.05)

    # Deterministic gate exercising both branches:
    # instance 0 is augmented (scaled channels), instance 1 is skipped in-kernel.
    gray_tag = jnp.array([True, False])
    ref_imgs, ref_avgs = _reference(image_groups, avg_groups, gray_tag)

    new_imgs, new_bboxes, new_avgs, out_masks = transform(
        image_groups, bbox_groups, avg_groups, masks, gray_tag=gray_tag)
    jax.block_until_ready(new_imgs)

    for got, ref in zip(new_imgs, ref_imgs):
        assert got.shape == ref.shape and got.dtype == ref.dtype
        assert jnp.allclose(got, ref, atol=1e-6), "image mismatch"
    for got, ref in zip(new_avgs, ref_avgs):
        assert jnp.allclose(got, ref, atol=1e-6), "avg mismatch"
    assert jnp.array_equal(new_bboxes[0], bbox_groups[0])
    assert jnp.array_equal(new_bboxes[1], bbox_groups[1])
    assert jnp.array_equal(out_masks, masks)

    # Also exercise the stochastic path of the original module (rand <= gray_prob).
    stoch = transform(image_groups, bbox_groups, avg_groups, masks, key=ktag)
    jax.block_until_ready(stoch[0])

    print("KERNEL_OK")
</pallas_src>

<mosaic_0001>
module attributes {stable_mosaic.version = 11 : i64} {
  func.func @kernel(%arg0: i32, %arg1: memref<6xf32, #tpu.memory_space<smem>>, %arg2: memref<6x2x128xf32, #tpu.memory_space<any>>, %arg3: memref<6x2x128xf32, #tpu.memory_space<any>>, %arg4: memref<6x2x128xf32, #tpu.memory_space<any>>, %arg5: memref<6x2x128xf32, #tpu.memory_space<any>>, %arg6: memref<2x2x128xf32, #tpu.memory_space<vmem>>, %arg7: memref<2x!tpu.dma_semaphore, #tpu.memory_space<semaphore_mem>>) attributes {dimension_semantics = [#tpu.dimension_semantics<parallel>], iteration_bounds = array<i64: 6>, scalar_prefetch = 1 : i64, scratch_operands = 2 : i64, tpu.core_type = #tpu.core_type<tc>, window_params = [{}, {}, {}, {}]} {
    %0 = arith.index_cast %arg0 : i32 to index
    %1 = memref.load %arg1[%0] : memref<6xf32, #tpu.memory_space<smem>>
    %cst = arith.constant 1.000000e+00 : f32
    %2 = arith.cmpf one, %1, %cst : f32
    %3 = arith.extui %2 : i1 to i32
    %c0_i32 = arith.constant 0 : i32
    %4 = arith.cmpi ne, %3, %c0_i32 : i32
    scf.if %4 {
      %c0_i32_0 = arith.constant 0 : i32
      %c0_i32_1 = arith.constant 0 : i32
      %c0_i32_2 = arith.constant 0 : i32
      %c0_i32_3 = arith.constant 0 : i32
      %5 = tpu.memref_slice %arg2[%arg0, %c0_i32_2, %c0_i32_3] : memref<6x2x128xf32, #tpu.memory_space<any>> -> memref<1x2x128xf32, #tpu.memory_space<any>>
      %6 = tpu.memref_squeeze %5 : memref<1x2x128xf32, #tpu.memory_space<any>> -> memref<2x128xf32, #tpu.memory_space<any>>
      %c0_i32_4 = arith.constant 0 : i32
      %c0_i32_5 = arith.constant 0 : i32
      %7 = tpu.memref_slice %arg6[%c0_i32_0, %c0_i32_4, %c0_i32_5] : memref<2x2x128xf32, #tpu.memory_space<vmem>> -> memref<1x2x128xf32, #tpu.memory_space<vmem>>
      %8 = tpu.memref_squeeze %7 : memref<1x2x128xf32, #tpu.memory_space<vmem>> -> memref<2x128xf32, #tpu.memory_space<vmem>>
      %9 = tpu.memref_slice %arg7[%c0_i32_1] : memref<2x!tpu.dma_semaphore, #tpu.memory_space<semaphore_mem>> -> memref<1x!tpu.dma_semaphore, #tpu.memory_space<semaphore_mem>>
      %10 = tpu.memref_squeeze %9 : memref<1x!tpu.dma_semaphore, #tpu.memory_space<semaphore_mem>> -> memref<!tpu.dma_semaphore, #tpu.memory_space<semaphore_mem>>
      tpu.enqueue_dma source(%6 : memref<2x128xf32, #tpu.memory_space<any>>) target(%8 : memref<2x128xf32, #tpu.memory_space<vmem>>) target_semaphore(%10 : memref<!tpu.dma_semaphore, #tpu.memory_space<semaphore_mem>>)
      %c1_i32 = arith.constant 1 : i32
      %c1_i32_6 = arith.constant 1 : i32
      %c0_i32_7 = arith.constant 0 : i32
      %c0_i32_8 = arith.constant 0 : i32
      %11 = tpu.memref_slice %arg3[%arg0, %c0_i32_7, %c0_i32_8] : memref<6x2x128xf32, #tpu.memory_space<any>> -> memref<1x2x128xf32, #tpu.memory_space<any>>
      %12 = tpu.memref_squeeze %11 : memref<1x2x128xf32, #tpu.memory_space<any>> -> memref<2x128xf32, #tpu.memory_space<any>>
      %c0_i32_9 = arith.constant 0 : i32
      %c0_i32_10 = arith.constant 0 : i32
      %13 = tpu.memref_slice %arg6[%c1_i32, %c0_i32_9, %c0_i32_10] : memref<2x2x128xf32, #tpu.memory_space<vmem>> -> memref<1x2x128xf32, #tpu.memory_space<vmem>>
      %14 = tpu.memref_squeeze %13 : memref<1x2x128xf32, #tpu.memory_space<vmem>> -> memref<2x128xf32, #tpu.memory_space<vmem>>
      %15 = tpu.memref_slice %arg7[%c1_i32_6] : memref<2x!tpu.dma_semaphore, #tpu.memory_space<semaphore_mem>> -> memref<1x!tpu.dma_semaphore, #tpu.memory_space<semaphore_mem>>
      %16 = tpu.memref_squeeze %15 : memref<1x!tpu.dma_semaphore, #tpu.memory_space<semaphore_mem>> -> memref<!tpu.dma_semaphore, #tpu.memory_space<semaphore_mem>>
      tpu.enqueue_dma source(%12 : memref<2x128xf32, #tpu.memory_space<any>>) target(%14 : memref<2x128xf32, #tpu.memory_space<vmem>>) target_semaphore(%16 : memref<!tpu.dma_semaphore, #tpu.memory_space<semaphore_mem>>)
      %c0_i32_11 = arith.constant 0 : i32
      %c0_i32_12 = arith.constant 0 : i32
      %c0_i32_13 = arith.constant 0 : i32
      %c0_i32_14 = arith.constant 0 : i32
      %17 = tpu.memref_slice %arg2[%arg0, %c0_i32_13, %c0_i32_14] : memref<6x2x128xf32, #tpu.memory_space<any>> -> memref<1x2x128xf32, #tpu.memory_space<any>>
      %18 = tpu.memref_squeeze %17 : memref<1x2x128xf32, #tpu.memory_space<any>> -> memref<2x128xf32, #tpu.memory_space<any>>
      %c0_i32_15 = arith.constant 0 : i32
      %c0_i32_16 = arith.constant 0 : i32
      %19 = tpu.memref_slice %arg6[%c0_i32_11, %c0_i32_15, %c0_i32_16] : memref<2x2x128xf32, #tpu.memory_space<vmem>> -> memref<1x2x128xf32, #tpu.memory_space<vmem>>
      %20 = tpu.memref_squeeze %19 : memref<1x2x128xf32, #tpu.memory_space<vmem>> -> memref<2x128xf32, #tpu.memory_space<vmem>>
      %21 = tpu.memref_slice %arg7[%c0_i32_12] : memref<2x!tpu.dma_semaphore, #tpu.memory_space<semaphore_mem>> -> memref<1x!tpu.dma_semaphore, #tpu.memory_space<semaphore_mem>>
      %22 = tpu.memref_squeeze %21 : memref<1x!tpu.dma_semaphore, #tpu.memory_space<semaphore_mem>> -> memref<!tpu.dma_semaphore, #tpu.memory_space<semaphore_mem>>
      tpu.wait_dma2 semaphore(%22 : memref<!tpu.dma_semaphore, #tpu.memory_space<semaphore_mem>>) src(%18 : memref<2x128xf32, #tpu.memory_space<any>>) dst(%20 : memref<2x128xf32, #tpu.memory_space<vmem>>)
      %c0 = arith.constant 0 : index
      %c0_17 = arith.constant 0 : index
      %c0_18 = arith.constant 0 : index
      %23 = vector.load %arg6[%c0, %c0_17, %c0_18] : memref<2x2x128xf32, #tpu.memory_space<vmem>>, vector<1x2x128xf32>
      %24 = vector.shape_cast %23 : vector<1x2x128xf32> to vector<2x128xf32>
      %25 = vector.broadcast %1 : f32 to vector<2x128xf32>
      %26 = arith.mulf %24, %25 : vector<2x128xf32>
      %c0_19 = arith.constant 0 : index
      %c0_20 = arith.constant 0 : index
      %c0_21 = arith.constant 0 : index
      %27 = vector.load %arg6[%c0_19, %c0_20, %c0_21] : memref<2x2x128xf32, #tpu.memory_space<vmem>>, vector<1x2x128xf32>
      %28 = vector.shape_cast %27 : vector<1x2x128xf32> to vector<2x128xf32>
      %29 = vector.shape_cast %26 : vector<2x128xf32> to vector<1x2x128xf32>
      tpu.vector_store %arg6[%c0_19, %c0_20, %c0_21], %29 {strides = array<i32>} : memref<2x2x128xf32, #tpu.memory_space<vmem>>, vector<1x2x128xf32>,
      %c0_i32_22 = arith.constant 0 : i32
      %c0_i32_23 = arith.constant 0 : i32
      %c0_i32_24 = arith.constant 0 : i32
      %c0_i32_25 = arith.constant 0 : i32
      %30 = tpu.memref_slice %arg6[%c0_i32_22, %c0_i32_24, %c0_i32_25] : memref<2x2x128xf32, #tpu.memory_space<vmem>> -> memref<1x2x128xf32, #tpu.memory_space<vmem>>
      %31 = tpu.memref_squeeze %30 : memref<1x2x128xf32, #tpu.memory_space<vmem>> -> memref<2x128xf32, #tpu.memory_space<vmem>>
      %c0_i32_26 = arith.constant 0 : i32
      %c0_i32_27 = arith.constant 0 : i32
      %32 = tpu.memref_slice %arg4[%arg0, %c0_i32_26, %c0_i32_27] : memref<6x2x128xf32, #tpu.memory_space<any>> -> memref<1x2x128xf32, #tpu.memory_space<any>>
      %33 = tpu.memref_squeeze %32 : memref<1x2x128xf32, #tpu.memory_space<any>> -> memref<2x128xf32, #tpu.memory_space<any>>
      %34 = tpu.memref_slice %arg7[%c0_i32_23] : memref<2x!tpu.dma_semaphore, #tpu.memory_space<semaphore_mem>> -> memref<1x!tpu.dma_semaphore, #tpu.memory_space<semaphore_mem>>
      %35 = tpu.memref_squeeze %34 : memref<1x!tpu.dma_semaphore, #tpu.memory_space<semaphore_mem>> -> memref<!tpu.dma_semaphore, #tpu.memory_space<semaphore_mem>>
      tpu.enqueue_dma source(%31 : memref<2x128xf32, #tpu.memory_space<vmem>>) target(%33 : memref<2x128xf32, #tpu.memory_space<any>>) target_semaphore(%35 : memref<!tpu.dma_semaphore, #tpu.memory_space<semaphore_mem>>)
      %c1_i32_28 = arith.constant 1 : i32
      %c1_i32_29 = arith.constant 1 : i32
      %c0_i32_30 = arith.constant 0 : i32
      %c0_i32_31 = arith.constant 0 : i32
      %36 = tpu.memref_slice %arg3[%arg0, %c0_i32_30, %c0_i32_31] : memref<6x2x128xf32, #tpu.memory_space<any>> -> memref<1x2x128xf32, #tpu.memory_space<any>>
      %37 = tpu.memref_squeeze %36 : memref<1x2x128xf32, #tpu.memory_space<any>> -> memref<2x128xf32, #tpu.memory_space<any>>
      %c0_i32_32 = arith.constant 0 : i32
      %c0_i32_33 = arith.constant 0 : i32
      %38 = tpu.memref_slice %arg6[%c1_i32_28, %c0_i32_32, %c0_i32_33] : memref<2x2x128xf32, #tpu.memory_space<vmem>> -> memref<1x2x128xf32, #tpu.memory_space<vmem>>
      %39 = tpu.memref_squeeze %38 : memref<1x2x128xf32, #tpu.memory_space<vmem>> -> memref<2x128xf32, #tpu.memory_space<vmem>>
      %40 = tpu.memref_slice %arg7[%c1_i32_29] : memref<2x!tpu.dma_semaphore, #tpu.memory_space<semaphore_mem>> -> memref<1x!tpu.dma_semaphore, #tpu.memory_space<semaphore_mem>>
      %41 = tpu.memref_squeeze %40 : memref<1x!tpu.dma_semaphore, #tpu.memory_space<semaphore_mem>> -> memref<!tpu.dma_semaphore, #tpu.memory_space<semaphore_mem>>
      tpu.wait_dma2 semaphore(%41 : memref<!tpu.dma_semaphore, #tpu.memory_space<semaphore_mem>>) src(%37 : memref<2x128xf32, #tpu.memory_space<any>>) dst(%39 : memref<2x128xf32, #tpu.memory_space<vmem>>)
      %c1 = arith.constant 1 : index
      %c0_34 = arith.constant 0 : index
      %c0_35 = arith.constant 0 : index
      %42 = vector.load %arg6[%c1, %c0_34, %c0_35] : memref<2x2x128xf32, #tpu.memory_space<vmem>>, vector<1x2x128xf32>
      %43 = vector.shape_cast %42 : vector<1x2x128xf32> to vector<2x128xf32>
      %44 = vector.broadcast %1 : f32 to vector<2x128xf32>
      %45 = arith.mulf %43, %44 : vector<2x128xf32>
      %c1_36 = arith.constant 1 : index
      %c0_37 = arith.constant 0 : index
      %c0_38 = arith.constant 0 : index
      %46 = vector.load %arg6[%c1_36, %c0_37, %c0_38] : memref<2x2x128xf32, #tpu.memory_space<vmem>>, vector<1x2x128xf32>
      %47 = vector.shape_cast %46 : vector<1x2x128xf32> to vector<2x128xf32>
      %48 = vector.shape_cast %45 : vector<2x128xf32> to vector<1x2x128xf32>
      tpu.vector_store %arg6[%c1_36, %c0_37, %c0_38], %48 {strides = array<i32>} : memref<2x2x128xf32, #tpu.memory_space<vmem>>, vector<1x2x128xf32>,
      %c1_i32_39 = arith.constant 1 : i32
      %c1_i32_40 = arith.constant 1 : i32
      %c0_i32_41 = arith.constant 0 : i32
      %c0_i32_42 = arith.constant 0 : i32
      %49 = tpu.memref_slice %arg6[%c1_i32_39, %c0_i32_41, %c0_i32_42] : memref<2x2x128xf32, #tpu.memory_space<vmem>> -> memref<1x2x128xf32, #tpu.memory_space<vmem>>
      %50 = tpu.memref_squeeze %49 : memref<1x2x128xf32, #tpu.memory_space<vmem>> -> memref<2x128xf32, #tpu.memory_space<vmem>>
      %c0_i32_43 = arith.constant 0 : i32
      %c0_i32_44 = arith.constant 0 : i32
      %51 = tpu.memref_slice %arg5[%arg0, %c0_i32_43, %c0_i32_44] : memref<6x2x128xf32, #tpu.memory_space<any>> -> memref<1x2x128xf32, #tpu.memory_space<any>>
      %52 = tpu.memref_squeeze %51 : memref<1x2x128xf32, #tpu.memory_space<any>> -> memref<2x128xf32, #tpu.memory_space<any>>
      %53 = tpu.memref_slice %arg7[%c1_i32_40] : memref<2x!tpu.dma_semaphore, #tpu.memory_space<semaphore_mem>> -> memref<1x!tpu.dma_semaphore, #tpu.memory_space<semaphore_mem>>
      %54 = tpu.memref_squeeze %53 : memref<1x!tpu.dma_semaphore, #tpu.memory_space<semaphore_mem>> -> memref<!tpu.dma_semaphore, #tpu.memory_space<semaphore_mem>>
      tpu.enqueue_dma source(%50 : memref<2x128xf32, #tpu.memory_space<vmem>>) target(%52 : memref<2x128xf32, #tpu.memory_space<any>>) target_semaphore(%54 : memref<!tpu.dma_semaphore, #tpu.memory_space<semaphore_mem>>)
      %c0_i32_45 = arith.constant 0 : i32
      %c0_i32_46 = arith.constant 0 : i32
      %c0_i32_47 = arith.constant 0 : i32
      %c0_i32_48 = arith.constant 0 : i32
      %55 = tpu.memref_slice %arg6[%c0_i32_45, %c0_i32_47, %c0_i32_48] : memref<2x2x128xf32, #tpu.memory_space<vmem>> -> memref<1x2x128xf32, #tpu.memory_space<vmem>>
      %56 = tpu.memref_squeeze %55 : memref<1x2x128xf32, #tpu.memory_space<vmem>> -> memref<2x128xf32, #tpu.memory_space<vmem>>
      %c0_i32_49 = arith.constant 0 : i32
      %c0_i32_50 = arith.constant 0 : i32
      %57 = tpu.memref_slice %arg4[%arg0, %c0_i32_49, %c0_i32_50] : memref<6x2x128xf32, #tpu.memory_space<any>> -> memref<1x2x128xf32, #tpu.memory_space<any>>
      %58 = tpu.memref_squeeze %57 : memref<1x2x128xf32, #tpu.memory_space<any>> -> memref<2x128xf32, #tpu.memory_space<any>>
      %59 = tpu.memref_slice %arg7[%c0_i32_46] : memref<2x!tpu.dma_semaphore, #tpu.memory_space<semaphore_mem>> -> memref<1x!tpu.dma_semaphore, #tpu.memory_space<semaphore_mem>>
      %60 = tpu.memref_squeeze %59 : memref<1x!tpu.dma_semaphore, #tpu.memory_space<semaphore_mem>> -> memref<!tpu.dma_semaphore, #tpu.memory_space<semaphore_mem>>
      tpu.wait_dma2 semaphore(%60 : memref<!tpu.dma_semaphore, #tpu.memory_space<semaphore_mem>>) src(%56 : memref<2x128xf32, #tpu.memory_space<vmem>>) dst(%58 : memref<2x128xf32, #tpu.memory_space<any>>)
      %c1_i32_51 = arith.constant 1 : i32
      %c1_i32_52 = arith.constant 1 : i32
      %c0_i32_53 = arith.constant 0 : i32
      %c0_i32_54 = arith.constant 0 : i32
      %61 = tpu.memref_slice %arg6[%c1_i32_51, %c0_i32_53, %c0_i32_54] : memref<2x2x128xf32, #tpu.memory_space<vmem>> -> memref<1x2x128xf32, #tpu.memory_space<vmem>>
      %62 = tpu.memref_squeeze %61 : memref<1x2x128xf32, #tpu.memory_space<vmem>> -> memref<2x128xf32, #tpu.memory_space<vmem>>
      %c0_i32_55 = arith.constant 0 : i32
      %c0_i32_56 = arith.constant 0 : i32
      %63 = tpu.memref_slice %arg5[%arg0, %c0_i32_55, %c0_i32_56] : memref<6x2x128xf32, #tpu.memory_space<any>> -> memref<1x2x128xf32, #tpu.memory_space<any>>
      %64 = tpu.memref_squeeze %63 : memref<1x2x128xf32, #tpu.memory_space<any>> -> memref<2x128xf32, #tpu.memory_space<any>>
      %65 = tpu.memref_slice %arg7[%c1_i32_52] : memref<2x!tpu.dma_semaphore, #tpu.memory_space<semaphore_mem>> -> memref<1x!tpu.dma_semaphore, #tpu.memory_space<semaphore_mem>>
      %66 = tpu.memref_squeeze %65 : memref<1x!tpu.dma_semaphore, #tpu.memory_space<semaphore_mem>> -> memref<!tpu.dma_semaphore, #tpu.memory_space<semaphore_mem>>
      tpu.wait_dma2 semaphore(%66 : memref<!tpu.dma_semaphore, #tpu.memory_space<semaphore_mem>>) src(%62 : memref<2x128xf32, #tpu.memory_space<vmem>>) dst(%64 : memref<2x128xf32, #tpu.memory_space<any>>)
    } else {
    }
    return
  }
}

</mosaic_0001>

<llo_original>
// kernel: tpu_custom_call.1
$region0: #{tpu_custom_call.1}
  #allocation0 [shape = 'u32[]', space=smem, size = 0x4, offset = 0x4, fixed_abs, tag = 'smem constant byte address 0x4 - core index']
  #allocation1 [shape = 'u32[144,128]{1,0:T(1,128)}', space=vmem, size = 0x12000, scoped, tag = 'internal scratch']
  #allocation2 [shape = 'f32[2,2,128]{2,1,0:T(2,128)}', space=vmem, size = 0x800, scoped, tag = 'scratch operand']
  #allocation3 [shape = 's32[2]{0}', space=sflag, size = 0x8, scoped, tag = 'scratch operand']
  #allocation4 [shape = 's32[1]{0}', space=sflag, size = 0x4, scoped, tag = 'scoped memory for tpu_custom_call.1']
  #allocation5 [shape = 'u8[512]{0}', space=smem, size = 0x200, scoped, tag = 'prefetched SMEM operand 0']
  #allocation6 [shape = 's32[]', space=sflag, size = 0x4, offset = 0, fixed_abs, tag = 'sflag constant byte address 0x0 - dummy sync flag']
  #allocation7 [shape = 's32[]', space=sflag, size = 0x4, offset = 0, fixed_abs, tag = 'sflag constant byte address 0x0 - dummy sync flag']
  #allocation8 [shape = 'u32[]', space=smem, size = 0x4, offset = 0x44, fixed_abs, tag = 'smem constant byte address 0x44 - assertion arg 0']
  #allocation9 [shape = 'u32[]', space=smem, size = 0x4, offset = 0x48, fixed_abs, tag = 'smem constant byte address 0x48 - assertion arg 1']
  #allocation10 [shape = 's32[]', space=sflag, size = 0x4, offset = 0, fixed_abs, tag = 'sflag constant byte address 0x0 - dummy sync flag']
  #allocation11 [shape = 's32[]', space=sflag, size = 0x4, offset = 0, fixed_abs, tag = 'sflag constant byte address 0x0 - dummy sync flag']
  #allocation12 [shape = 's32[]', space=sflag, size = 0x4, offset = 0, fixed_abs, tag = 'sflag constant byte address 0x0 - dummy sync flag']
  #allocation13 [shape = 's32[]', space=sflag, size = 0x4, offset = 0, fixed_abs, tag = 'sflag constant byte address 0x0 - dummy sync flag']
  #allocation14 [shape = 's32[]', space=sflag, size = 0x4, offset = 0, fixed_abs, tag = 'sflag constant byte address 0x0 - dummy sync flag']
  #allocation15 [shape = 's32[]', space=sflag, size = 0x4, offset = 0, fixed_abs, tag = 'sflag constant byte address 0x0 - dummy sync flag']
  %s0 = inlined_call_operand.vmem [shape: f32[6], index: 0, kind: input, shape index: {}]
  %s1 = inlined_call_operand.hbm [shape: f32[6,2,128], index: 1, kind: input, shape index: {}, may-alias: {1,3}]
  %s2 = inlined_call_operand.hbm [shape: f32[6,2,128], index: 2, kind: input, shape index: {}, may-alias: {2,4}]
  %s3 = inlined_call_operand.hbm [shape: f32[6,2,128], index: 3, kind: output, shape index: {0}, may-alias: {1,3}]
  %s4 = inlined_call_operand.hbm [shape: f32[6,2,128], index: 4, kind: output, shape index: {1}, may-alias: {2,4}]
  %5 = xla_tuple %s3, %s4
  %s6 = sld [smem:[#allocation0]]
  $region29: #{tpu_custom_call.1} parent=0
    _
  %s8 = ssub.s32 1, %s6
  %s9 = scalar_select 0, %s8, %s6
  %s10 = sshll.u32 %s0, 4
  %s11 = int_to_ptr.vmem [resolvable:$true] %s10
  %13 = dma.vmem_to_smem %s11, 16, [#allocation5], [#allocation4]
  %14 = dma.done [#allocation4], 16
  %15 = sfence
  loop: start=0, step=1, limit=6
  $region2: #{tpu_custom_call.1} parent=0 // loop_pre_header
    _
  $region3: #{tpu_custom_call.1} parent=0 // loop_header
    %s17 = sphi 0, %s21
    %p18 = scmp.ge.s32.totalorder %s17, 6
  $region4: #{tpu_custom_call.1} parent=0 // loop_header_branch
    %20 = sbr.rel (%p18) target = $region8
  $region5: #{tpu_custom_call.1} parent=0 // loop_body
    %s22 = sadd.s32 %s17, 1
    %s23 = sld [smem:[#allocation5 + %s17]]
    %p24 = scmp.ne.f32.partialorder %s23, 1.0
    // Predicated region
    $region9: #{tpu_custom_call.1} parent=5 // pred_check
      %p25 = pneg %p24
    $region10: #{tpu_custom_call.1} parent=5 // pred_check_branch
      %27 = sbr.rel (%p25) target = $region12
    $region11: #{tpu_custom_call.1} parent=5 // pred_region
      %s28 = smul.u32 %s17, 2
      %s29 = smul.addr %s28, 16
      %s30 = scalar_lea.hbm %s1, %s29
      // Predicated region
      $region13: #{tpu_custom_call.1} parent=11 // pred_check
        _
      $region14: #{tpu_custom_call.1} parent=11 // pred_check_branch
        %32 = sbr.rel target = $region16
      $region15: #{tpu_custom_call.1} parent=11 // pred_region
        %33 = sst [smem:[#allocation8]] [#allocation7]
        %34 = sst [smem:[#allocation9]] [#allocation6]
      $region16: #{tpu_custom_call.1} parent=11 // pred_fallthru
        _
      %36 = shalt.err (0)
      %s38 = sshll.u32 [#allocation2], 4
      %s39 = int_to_ptr.vmem [resolvable:$true] %s38
      %41 = dma.hbm_to_vmem [thread:$0]  %s30, 32, %s39, [#allocation3]
      %s42 = smul.addr %s28, 16
      %s43 = scalar_lea.hbm %s2, %s42
      %s44 = scalar_lea.vmem [#allocation2], 2
      %s45 = scalar_lea.sflag [#allocation3], 1
      // Predicated region
      $region17: #{tpu_custom_call.1} parent=11 // pred_check
        _
      $region18: #{tpu_custom_call.1} parent=11 // pred_check_branch
        %47 = sbr.rel target = $region20
      $region19: #{tpu_custom_call.1} parent=11 // pred_region
        %48 = sst [smem:[#allocation8]] [#allocation11]
        %49 = sst [smem:[#allocation9]] [#allocation10]
      $region20: #{tpu_custom_call.1} parent=11 // pred_fallthru
        _
      %51 = shalt.err (0)
      %s53 = sshll.u32 %s44, 4
      %s54 = int_to_ptr.vmem [resolvable:$true] %s53
      %56 = dma.hbm_to_vmem [thread:$0]  %s43, 32, %s54, %s45
      %s57 = smul.u32 2, 1
      %s58 = sshll.u32 %s57, 4
      %59 = dma.done [#allocation3], %s58
      %v60 = vld [vmem:[#allocation2] sm:$0x3]
      %v61 = vstv %s23
      %v62 = vmul.f32 %v60, %v61
      %63 = vst [vmem:[#allocation2] sm:$0x3] %v62
      %s64 = smul.addr %s28, 16
      %s65 = scalar_lea.hbm %s3, %s64
      // Predicated region
      $region21: #{tpu_custom_call.1} parent=11 // pred_check
        _
      $region22: #{tpu_custom_call.1} parent=11 // pred_check_branch
        %67 = sbr.rel target = $region24
      $region23: #{tpu_custom_call.1} parent=11 // pred_region
        %68 = sst [smem:[#allocation8]] [#allocation13]
        %69 = sst [smem:[#allocation9]] [#allocation12]
      $region24: #{tpu_custom_call.1} parent=11 // pred_fallthru
        _
      %71 = shalt.err (0)
      %s73 = sshll.u32 [#allocation2], 4
      %s74 = int_to_ptr.vmem [resolvable:$true] %s73
      %76 = dma.vmem_to_hbm [thread:$0]  %s74, 32, %s65, [#allocation3]
      %s77 = sshll.u32 %s57, 4
      %78 = dma.done %s45, %s77
      %v79 = vld [vmem:[%s44] sm:$0x3]
      %v80 = vmul.f32 %v79, %v61
      %81 = vst [vmem:[%s44] sm:$0x3] %v80
      %s82 = smul.addr %s28, 16
      %s83 = scalar_lea.hbm %s4, %s82
      // Predicated region
      $region25: #{tpu_custom_call.1} parent=11 // pred_check
        _
      $region26: #{tpu_custom_call.1} parent=11 // pred_check_branch
        %85 = sbr.rel target = $region28
      $region27: #{tpu_custom_call.1} parent=11 // pred_region
        %86 = sst [smem:[#allocation8]] [#allocation15]
        %87 = sst [smem:[#allocation9]] [#allocation14]
      $region28: #{tpu_custom_call.1} parent=11 // pred_fallthru
        _
      %89 = shalt.err (0)
      %s91 = sshll.u32 %s44, 4
      %s92 = int_to_ptr.vmem [resolvable:$true] %s91
      %94 = dma.vmem_to_hbm [thread:$0]  %s92, 32, %s83, %s45
      %s95 = sshll.u32 %s57, 4
      %96 = dma.done [#allocation3], %s95
      %s97 = sshll.u32 %s57, 4
      %98 = dma.done %s45, %s97
    $region12: #{tpu_custom_call.1} parent=5 // pred_fallthru
      _
  $region6: #{tpu_custom_call.1} parent=0 // loop_footer
    %s21 = sadd.s32 1, %s17
  $region7: #{tpu_custom_call.1} parent=0 // loop_footer_branch
    %16 = sbr.rel target = $region3
  $region8: #{tpu_custom_call.1} parent=0 // loop_exit
    _
  %99 = vsyncmov [#allocation3]
  %s100 = vpop.sfrf %99
  %p101 = scmp.eq.s32.totalorder %s100, 0
  %p102 = pneg %p101
  %104 = shalt.err (%p102)
  %s105 = scalar_lea.sflag [#allocation3], 1
  %106 = vsyncmov %s105
  %s107 = vpop.sfrf %106
  %p108 = scmp.eq.s32.totalorder %s107, 0
  %p109 = pneg %p108
  %111 = shalt.err (%p109)

</llo_original>
